<compile_context>
chip_gen: v7x
topology: tpu7x:2x2x1
jax: 0.10.0
libtpu: 0.0.40
codegen_flags: <defaults>
</compile_context>

<pallas_src>
import jax
import jax.numpy as jnp
from jax.experimental import pallas as pl
from jax.experimental.pallas import tpu as pltpu


def snp_kernel(x_ref, padq_ref, padk_ref, w0_ref, w12_ref, b_ref, prob_ref):
    x = x_ref[...]                         # (tb, S, E) bf16 embeddings for this batch tile
    tb, S, E = x.shape
    P = w0_ref.shape[-1]

    # Pad mask built from broadcast compares only (both layouts provided by the wrapper,
    # so there is no in-kernel sublane->lane transpose).
    pq = padq_ref[...] > 0.0               # (tb, S, 1)
    pk = padk_ref[...] > 0.0               # (tb, 1, S)
    masked = jnp.logical_or(pq, pk)        # (tb, S, S)

    # --- ScaledDotProductAttention (bf16 MXU operands, f32 accumulation / softmax) ---
    inv_sqrt_dim = jnp.float32(1.0 / (float(E) ** 0.5))
    score = jnp.einsum('bqe,bke->bqk', x, x,
                       preferred_element_type=jnp.float32) * inv_sqrt_dim
    # PyTorch uses -inf then zeroes masked attn entries afterwards; -1e30 + post-zeroing
    # reproduces the same values without NaNs on fully-masked (pad-query) rows.
    score = jnp.where(masked, jnp.float32(-1e30), score)
    score = score - jnp.max(score, axis=-1, keepdims=True)
    ex = jnp.exp(score)
    attn = ex / jnp.sum(ex, axis=-1, keepdims=True)
    attn = jnp.where(masked, jnp.float32(0.0), attn)
    ctx = jnp.einsum('bqk,bke->bqe', attn.astype(jnp.bfloat16), x,
                     preferred_element_type=jnp.float32)            # (tb, S, E) f32

    # --- mean pool fused into layer 1: plain sum here, 1/S folded into w0 offline ---
    pooled_sum = jnp.sum(ctx, axis=1)                                # (tb, E)

    # --- MLP: Linear(+folded BN, +folded 1/S on layer 1) -> ReLU, x3.
    #     w0 is (E,P); w12/b are zero-padded lane-dense so extra lanes stay exactly 0. ---
    h = jnp.dot(pooled_sum, w0_ref[...], preferred_element_type=jnp.float32) + b_ref[0]
    h = jnp.maximum(h, 0.0)
    h = jnp.dot(h, w12_ref[0], preferred_element_type=jnp.float32) + b_ref[1]
    h = jnp.maximum(h, 0.0)
    h = jnp.dot(h, w12_ref[1], preferred_element_type=jnp.float32) + b_ref[2]
    h = jnp.maximum(h, 0.0)                                          # (tb, P); lanes >= 2 are 0

    # --- final softmax over the 2 real class lanes, kept lane-dense (no slice, no pad) ---
    lane = jax.lax.broadcasted_iota(jnp.int32, h.shape, dimension=1)
    valid = lane < 2
    lg = jnp.where(valid, h, jnp.float32(-1e30))
    lg = lg - jnp.max(lg, axis=-1, keepdims=True)
    el = jnp.exp(lg)
    probs = el / jnp.sum(el, axis=-1, keepdims=True)
    probs = jnp.where(valid, probs, jnp.float32(0.0))                # (tb, P), lanes 0-1 real
    prob_ref[...] = probs[:, None, :]                                # (tb, 1, P) unmasked store


def fold_and_pack_mlp(params, seq_len, lane_pad=128):
    """Fold eval-mode BN (w*s, b*s+t) and the 1/S mean pool into the Linear weights,
    packing everything lane-dense: w0 (E,P), w12 (2,P,P), b (3,1,P)."""
    E = params['w1'].shape[0]
    P = lane_pad                                   # all layer widths (128, 64, 2) fit in 128
    w_eff, b_eff = [], []
    for i in range(1, 4):
        w, b = params[f'w{i}'], params[f'b{i}']
        s, t = params[f's{i}'], params[f't{i}']
        w_eff.append(w * s)                        # (in, out) * (1, out)
        b_eff.append(b * s + t)                    # (1, out)
    w_eff[0] = w_eff[0] / float(seq_len)           # fuse mean pool: kernel sums, wrapper scales

    w0 = jnp.zeros((E, P), jnp.float32).at[:, :w_eff[0].shape[1]].set(w_eff[0])
    w12 = jnp.zeros((2, P, P), jnp.float32)
    for j, w in enumerate(w_eff[1:]):
        fin, fout = w.shape
        w12 = w12.at[j, :fin, :fout].set(w)
    b_all = jnp.zeros((3, 1, P), jnp.float32)
    for j, b in enumerate(b_eff):
        b_all = b_all.at[j, :, :b.shape[1]].set(b)
    return w0, w12, b_all


def _pick_batch_tile(B, S, E, P, vmem_limit_bytes, max_tile=512, min_grid_steps=2):
    """Choose the batch tile: as large as the VMEM budget allows, capped at max_tile, but
    keeping >= min_grid_steps grid steps (when B allows) so v7x's two TensorCores both work."""
    per_row = (
        2 * 2 * S * E          # bf16 embedding tile, double-buffered
        + 2 * 4 * 2 * S        # pad flags in both layouts, double-buffered (tiny)
        + 4 * 3 * S * S        # mask / score / attn f32 temporaries
        + 4 * S * E            # ctx f32
        + 4 * 4 * P            # MLP activations + output row
    )
    budget = int(vmem_limit_bytes * 0.5)           # headroom for resident weights + spills
    tb_vmem = max(1, budget // max(per_row, 1))
    tb = min(B, max_tile, tb_vmem)
    if B >= min_grid_steps:
        tb = min(tb, pl.cdiv(B, min_grid_steps))
    return max(1, tb)


def snp_transform_forward(x_ids, emb_table, w0, w12, b_all, block_b=None):
    B, S = x_ids.shape
    E = emb_table.shape[1]
    P = w0.shape[-1]

    # TODO(synk): at large S/E the gather could move in-kernel via PrefetchScalarGridSpec
    # on x_ids (or manual DMA) to avoid one (B,S,E) HBM round trip; negligible at S=8.
    x_emb = emb_table[x_ids].astype(jnp.bfloat16)               # (B, S, E) bf16 MXU operand
    padf = (x_ids == 0).astype(jnp.float32)                     # (B, S) pad flags
    padq = padf[:, :, None]                                     # (B, S, 1)
    padk = padf[:, None, :]                                     # (B, 1, S)

    vmem_limit = 32 * 1024 * 1024                               # safe on v5e/v6e/v7x
    if block_b is None:
        tb = _pick_batch_tile(B, S, E, P, vmem_limit)
    else:
        tb = max(1, min(block_b, B))
    grid = (pl.cdiv(B, tb),)

    flops = B * (4 * S * S * E + 2 * (E * P + 2 * P * P) + 2 * S * E)
    transcendentals = B * (S * S + P)
    bytes_accessed = (2 * x_emb.size + 4 * (padq.size + padk.size)
                      + 4 * (w0.size + w12.size + b_all.size) + 4 * B * P)
    cost = pl.CostEstimate(flops=flops, transcendentals=transcendentals,
                           bytes_accessed=bytes_accessed)

    out = pl.pallas_call(
        snp_kernel,
        out_shape=jax.ShapeDtypeStruct((B, 1, P), jnp.float32),
        grid=grid,
        in_specs=[
            pl.BlockSpec((tb, S, E), lambda i: (i, 0, 0)),      # embeddings (bf16)
            pl.BlockSpec((tb, S, 1), lambda i: (i, 0, 0)),      # pad flag, query layout
            pl.BlockSpec((tb, 1, S), lambda i: (i, 0, 0)),      # pad flag, key layout
            pl.BlockSpec((E, P), lambda i: (0, 0)),             # layer-1 weight (BN+1/S folded)
            pl.BlockSpec((2, P, P), lambda i: (0, 0, 0)),       # layers 2-3 weights (resident)
            pl.BlockSpec((3, 1, P), lambda i: (0, 0, 0)),       # biases (resident)
        ],
        out_specs=pl.BlockSpec((tb, 1, P), lambda i: (i, 0, 0)),  # lane-dense output block
        compiler_params=pltpu.CompilerParams(
            dimension_semantics=("parallel",),                  # shard batch tiles across TCs
            vmem_limit_bytes=vmem_limit),
        cost_estimate=cost,
    )(x_emb, padq, padk, w0, w12, b_all)
    return out[:, 0, :2]


def init_params(key, vocab=1000, emb_dim=32):
    # TODO(synk): BatchNorm1d is implemented in eval mode (running stats mean=0, var=1);
    # training-mode batch statistics are not reproduced (dropout=0, so dropout is a no-op).
    ks = jax.random.split(key, 8)
    emb = jax.random.normal(ks[0], (vocab, emb_dim), jnp.float32)
    emb = emb.at[0].set(0.0)  # padding_idx=0
    dims = [emb_dim, 128, 64, 2]
    eps = 1e-5
    params = {'emb': emb}
    for i in range(3):
        fan_in, fan_out = dims[i], dims[i + 1]
        std = (2.0 / (fan_in + fan_out)) ** 0.5  # xavier_normal_
        w = std * jax.random.normal(ks[1 + 2 * i], (fan_in, fan_out), jnp.float32)
        b = 0.01 * jax.random.normal(ks[2 + 2 * i], (1, fan_out), jnp.float32)
        gamma = jnp.ones((1, fan_out), jnp.float32)
        beta = jnp.zeros((1, fan_out), jnp.float32)
        rmean = jnp.zeros((1, fan_out), jnp.float32)
        rvar = jnp.ones((1, fan_out), jnp.float32)
        scale = gamma / jnp.sqrt(rvar + eps)
        shift = beta - rmean * scale
        params[f'w{i + 1}'] = w
        params[f'b{i + 1}'] = b
        params[f's{i + 1}'] = scale
        params[f't{i + 1}'] = shift
    return params


def snp_transform_reference(x_ids, params):
    """Pure-JAX f32 reference mirroring the PyTorch forward (eval-mode BN, unfused)."""
    x_emb = params['emb'][x_ids].astype(jnp.float32)
    maskf = (x_ids == 0).astype(jnp.float32)
    m2 = jnp.maximum(maskf[:, :, None], maskf[:, None, :]) > 0.0
    E = x_emb.shape[-1]
    score = jnp.einsum('bqe,bke->bqk', x_emb, x_emb) / jnp.sqrt(jnp.float32(E))
    score = jnp.where(m2, -1e30, score)
    attn = jax.nn.softmax(score, axis=-1)
    attn = jnp.where(m2, 0.0, attn)
    ctx = jnp.einsum('bqk,bke->bqe', attn, x_emb)
    pooled = jnp.mean(ctx, axis=1)
    h = pooled
    for i in range(3):
        h = h @ params[f'w{i + 1}'] + params[f'b{i + 1}']
        h = h * params[f's{i + 1}'] + params[f't{i + 1}']
        h = jnp.maximum(h, 0.0)
    return jax.nn.softmax(h, axis=1)


if __name__ == "__main__":
    B, S, EMB, VOCAB = 8, 8, 32, 1000
    key = jax.random.PRNGKey(0)
    kp, kx = jax.random.split(key)
    params = init_params(kp, vocab=VOCAB, emb_dim=EMB)
    # One-time BN fold + mean-pool fold + lane-dense packing (not per call).
    w0, w12, b_all = fold_and_pack_mlp(params, seq_len=S)

    x_ids = jax.random.randint(kx, (B, S), 1, VOCAB).astype(jnp.int32)
    # introduce padding (token id 0) to exercise the mask path
    x_ids = x_ids.at[0, 5:].set(0)
    x_ids = x_ids.at[1, 7:].set(0)
    x_ids = x_ids.at[3, 2:].set(0)

    prob = jax.block_until_ready(
        snp_transform_forward(x_ids, params['emb'], w0, w12, b_all))
    ref = jax.block_until_ready(snp_transform_reference(x_ids, params))

    assert prob.shape == (B, 2), prob.shape
    assert bool(jnp.all(jnp.isfinite(prob)))
    # bf16 MXU operands (quantized embeddings / attention probs) vs. the pure-f32 reference:
    # expected deviation on these class probabilities is ~1e-3; 2e-2 tolerance is ample.
    assert jnp.allclose(prob, ref, atol=2e-2, rtol=2e-2), (prob, ref)
    print("KERNEL_OK")
</pallas_src>

<mosaic_0001>
module attributes {stable_mosaic.version = 11 : i64} {
  func.func @snp_kernel(%arg0: i32, %arg1: memref<4x8x32xbf16, #tpu.memory_space<vmem>>, %arg2: memref<4x8x1xf32, #tpu.memory_space<vmem>>, %arg3: memref<4x1x8xf32, #tpu.memory_space<vmem>>, %arg4: memref<32x128xf32, #tpu.memory_space<vmem>>, %arg5: memref<2x128x128xf32, #tpu.memory_space<vmem>>, %arg6: memref<3x1x128xf32, #tpu.memory_space<vmem>>, %arg7: memref<4x1x128xf32, #tpu.memory_space<vmem>>) attributes {dimension_semantics = [#tpu.dimension_semantics<parallel>], iteration_bounds = array<i64: 2>, scalar_prefetch = 0 : i64, scratch_operands = 0 : i64, tpu.core_type = #tpu.core_type<tc>, window_params = [{transform_indices = @transform_0, window_bounds = array<i64: 4, 8, 32>}, {transform_indices = @transform_1, window_bounds = array<i64: 4, 8, 1>}, {transform_indices = @transform_2, window_bounds = array<i64: 4, 1, 8>}, {pipeline_mode = #tpu.pipeline_mode<synchronous>, transform_indices = @transform_3, window_bounds = array<i64: 32, 128>}, {pipeline_mode = #tpu.pipeline_mode<synchronous>, transform_indices = @transform_4, window_bounds = array<i64: 2, 128, 128>}, {pipeline_mode = #tpu.pipeline_mode<synchronous>, transform_indices = @transform_5, window_bounds = array<i64: 3, 1, 128>}, {transform_indices = @transform_6, window_bounds = array<i64: 4, 1, 128>}]} {
    %c0 = arith.constant 0 : index
    %c0_0 = arith.constant 0 : index
    %c0_1 = arith.constant 0 : index
    %0 = vector.load %arg1[%c0, %c0_0, %c0_1] : memref<4x8x32xbf16, #tpu.memory_space<vmem>>, vector<4x8x32xbf16>
    %c0_2 = arith.constant 0 : index
    %c0_3 = arith.constant 0 : index
    %c0_4 = arith.constant 0 : index
    %1 = vector.load %arg2[%c0_2, %c0_3, %c0_4] : memref<4x8x1xf32, #tpu.memory_space<vmem>>, vector<4x8x1xf32>
    %cst = arith.constant 0.000000e+00 : f32
    %2 = vector.broadcast %cst : f32 to vector<4x8x1xf32>
    %3 = arith.cmpf ogt, %1, %2 : vector<4x8x1xf32>
    %c0_5 = arith.constant 0 : index
    %c0_6 = arith.constant 0 : index
    %c0_7 = arith.constant 0 : index
    %4 = vector.load %arg3[%c0_5, %c0_6, %c0_7] : memref<4x1x8xf32, #tpu.memory_space<vmem>>, vector<4x1x8xf32>
    %cst_8 = arith.constant 0.000000e+00 : f32
    %5 = vector.broadcast %cst_8 : f32 to vector<4x1x8xf32>
    %6 = arith.cmpf ogt, %4, %5 : vector<4x1x8xf32>
    %7 = vector.broadcast %3 : vector<4x8x1xi1> to vector<4x8x8xi1>
    %8 = vector.broadcast %6 : vector<4x1x8xi1> to vector<4x8x8xi1>
    %9 = arith.ori %7, %8 : vector<4x8x8xi1>
    "tpu.trace_start"() <{level = 10 : i32, message = "bqe,bke->bqk"}> : () -> ()
    %cst_9 = arith.constant dense<0.000000e+00> : vector<4x8x8xf32>
    %10 = tpu.matmul %0, %0, %cst_9 {dimension_numbers = #tpu.dot_dimension_numbers<[2], [2], [1], [1], [0, 0, 0, 1, 1, 1], [0], [0]>} : vector<4x8x32xbf16>, vector<4x8x32xbf16>, vector<4x8x8xf32> -> vector<4x8x8xf32>
    "tpu.trace_stop"() : () -> ()
    %cst_10 = arith.constant 0.176776692 : f32
    %11 = vector.broadcast %cst_10 : f32 to vector<4x8x8xf32>
    %12 = arith.mulf %10, %11 : vector<4x8x8xf32>
    %cst_11 = arith.constant -1.000000e+30 : f32
    %13 = vector.broadcast %cst_11 : f32 to vector<4x8x8xf32>
    %14 = arith.select %9, %13, %12 : vector<4x8x8xi1>, vector<4x8x8xf32>
    %cst_12 = arith.constant dense<0xFF800000> : vector<4x8xf32>
    %15 = vector.multi_reduction <maximumf>, %14, %cst_12 [2] : vector<4x8x8xf32> to vector<4x8xf32>
    %16 = vector.shape_cast %15 : vector<4x8xf32> to vector<4x8x1xf32>
    %17 = vector.broadcast %16 : vector<4x8x1xf32> to vector<4x8x8xf32>
    %18 = arith.subf %14, %17 : vector<4x8x8xf32>
    %19 = math.exp %18 : vector<4x8x8xf32>
    %cst_13 = arith.constant dense<0.000000e+00> : vector<4x8xf32>
    %20 = vector.multi_reduction <add>, %19, %cst_13 [2] : vector<4x8x8xf32> to vector<4x8xf32>
    %21 = vector.shape_cast %20 : vector<4x8xf32> to vector<4x8x1xf32>
    %22 = vector.broadcast %21 : vector<4x8x1xf32> to vector<4x8x8xf32>
    %23 = arith.divf %19, %22 : vector<4x8x8xf32>
    %cst_14 = arith.constant 0.000000e+00 : f32
    %24 = vector.broadcast %cst_14 : f32 to vector<4x8x8xf32>
    %25 = arith.select %9, %24, %23 : vector<4x8x8xi1>, vector<4x8x8xf32>
    %26 = arith.truncf %25 : vector<4x8x8xf32> to vector<4x8x8xbf16>
    "tpu.trace_start"() <{level = 10 : i32, message = "bqk,bke->bqe"}> : () -> ()
    %cst_15 = arith.constant dense<0.000000e+00> : vector<4x8x32xf32>
    %27 = tpu.matmul %26, %0, %cst_15 {dimension_numbers = #tpu.dot_dimension_numbers<[2], [1], [1], [2], [0, 0, 0, 1, 1, 2], [0], [0]>} : vector<4x8x8xbf16>, vector<4x8x32xbf16>, vector<4x8x32xf32> -> vector<4x8x32xf32>
    "tpu.trace_stop"() : () -> ()
    %cst_16 = arith.constant dense<0.000000e+00> : vector<4x32xf32>
    %28 = vector.multi_reduction <add>, %27, %cst_16 [1] : vector<4x8x32xf32> to vector<4x32xf32>
    %c0_17 = arith.constant 0 : index
    %c0_18 = arith.constant 0 : index
    %29 = vector.load %arg4[%c0_17, %c0_18] : memref<32x128xf32, #tpu.memory_space<vmem>>, vector<32x128xf32>
    %cst_19 = arith.constant dense<0.000000e+00> : vector<4x128xf32>
    %30 = tpu.matmul %28, %29, %cst_19 {dimension_numbers = #tpu.dot_dimension_numbers<[1], [0], [0], [1], [0, 0, 1, 1], [], []>} : vector<4x32xf32>, vector<32x128xf32>, vector<4x128xf32> -> vector<4x128xf32>
    %c0_20 = arith.constant 0 : index
    %c0_21 = arith.constant 0 : index
    %c0_22 = arith.constant 0 : index
    %31 = vector.load %arg6[%c0_20, %c0_21, %c0_22] : memref<3x1x128xf32, #tpu.memory_space<vmem>>, vector<1x1x128xf32>
    %32 = vector.shape_cast %31 : vector<1x1x128xf32> to vector<1x128xf32>
    %33 = vector.broadcast %32 : vector<1x128xf32> to vector<4x128xf32>
    %34 = arith.addf %30, %33 : vector<4x128xf32>
    %cst_23 = arith.constant 0.000000e+00 : f32
    %35 = vector.broadcast %cst_23 : f32 to vector<4x128xf32>
    %36 = arith.maximumf %34, %35 : vector<4x128xf32>
    %c0_24 = arith.constant 0 : index
    %c0_25 = arith.constant 0 : index
    %c0_26 = arith.constant 0 : index
    %37 = vector.load %arg5[%c0_24, %c0_25, %c0_26] : memref<2x128x128xf32, #tpu.memory_space<vmem>>, vector<1x128x128xf32>
    %38 = vector.shape_cast %37 : vector<1x128x128xf32> to vector<128x128xf32>
    %cst_27 = arith.constant dense<0.000000e+00> : vector<4x128xf32>
    %39 = tpu.matmul %36, %38, %cst_27 {dimension_numbers = #tpu.dot_dimension_numbers<[1], [0], [0], [1], [0, 0, 1, 1], [], []>} : vector<4x128xf32>, vector<128x128xf32>, vector<4x128xf32> -> vector<4x128xf32>
    %c1 = arith.constant 1 : index
    %c0_28 = arith.constant 0 : index
    %c0_29 = arith.constant 0 : index
    %40 = vector.load %arg6[%c1, %c0_28, %c0_29] : memref<3x1x128xf32, #tpu.memory_space<vmem>>, vector<1x1x128xf32>
    %41 = vector.shape_cast %40 : vector<1x1x128xf32> to vector<1x128xf32>
    %42 = vector.broadcast %41 : vector<1x128xf32> to vector<4x128xf32>
    %43 = arith.addf %39, %42 : vector<4x128xf32>
    %cst_30 = arith.constant 0.000000e+00 : f32
    %44 = vector.broadcast %cst_30 : f32 to vector<4x128xf32>
    %45 = arith.maximumf %43, %44 : vector<4x128xf32>
    %c1_31 = arith.constant 1 : index
    %c0_32 = arith.constant 0 : index
    %c0_33 = arith.constant 0 : index
    %46 = vector.load %arg5[%c1_31, %c0_32, %c0_33] : memref<2x128x128xf32, #tpu.memory_space<vmem>>, vector<1x128x128xf32>
    %47 = vector.shape_cast %46 : vector<1x128x128xf32> to vector<128x128xf32>
    %cst_34 = arith.constant dense<0.000000e+00> : vector<4x128xf32>
    %48 = tpu.matmul %45, %47, %cst_34 {dimension_numbers = #tpu.dot_dimension_numbers<[1], [0], [0], [1], [0, 0, 1, 1], [], []>} : vector<4x128xf32>, vector<128x128xf32>, vector<4x128xf32> -> vector<4x128xf32>
    %c2 = arith.constant 2 : index
    %c0_35 = arith.constant 0 : index
    %c0_36 = arith.constant 0 : index
    %49 = vector.load %arg6[%c2, %c0_35, %c0_36] : memref<3x1x128xf32, #tpu.memory_space<vmem>>, vector<1x1x128xf32>
    %50 = vector.shape_cast %49 : vector<1x1x128xf32> to vector<1x128xf32>
    %51 = vector.broadcast %50 : vector<1x128xf32> to vector<4x128xf32>
    %52 = arith.addf %48, %51 : vector<4x128xf32>
    %cst_37 = arith.constant 0.000000e+00 : f32
    %53 = vector.broadcast %cst_37 : f32 to vector<4x128xf32>
    %54 = arith.maximumf %52, %53 : vector<4x128xf32>
    %55 = tpu.iota {dimensions = array<i32: 1>} : vector<4x128xi32>
    %c2_i32 = arith.constant 2 : i32
    %56 = vector.broadcast %c2_i32 : i32 to vector<4x128xi32>
    %57 = arith.cmpi slt, %55, %56 : vector<4x128xi32>
    %cst_38 = arith.constant -1.000000e+30 : f32
    %58 = vector.broadcast %cst_38 : f32 to vector<4x128xf32>
    %59 = arith.select %57, %54, %58 : vector<4x128xi1>, vector<4x128xf32>
    %cst_39 = arith.constant dense<0xFF800000> : vector<4xf32>
    %60 = vector.multi_reduction <maximumf>, %59, %cst_39 [1] : vector<4x128xf32> to vector<4xf32>
    %61 = vector.shape_cast %60 : vector<4xf32> to vector<4x1xf32>
    %62 = vector.broadcast %61 : vector<4x1xf32> to vector<4x128xf32>
    %63 = arith.subf %59, %62 : vector<4x128xf32>
    %64 = math.exp %63 : vector<4x128xf32>
    %cst_40 = arith.constant dense<0.000000e+00> : vector<4xf32>
    %65 = vector.multi_reduction <add>, %64, %cst_40 [1] : vector<4x128xf32> to vector<4xf32>
    %66 = vector.shape_cast %65 : vector<4xf32> to vector<4x1xf32>
    %67 = vector.broadcast %66 : vector<4x1xf32> to vector<4x128xf32>
    %68 = arith.divf %64, %67 : vector<4x128xf32>
    %cst_41 = arith.constant 0.000000e+00 : f32
    %69 = vector.broadcast %cst_41 : f32 to vector<4x128xf32>
    %70 = arith.select %57, %68, %69 : vector<4x128xi1>, vector<4x128xf32>
    %71 = vector.shape_cast %70 : vector<4x128xf32> to vector<4x1x128xf32>
    %c0_42 = arith.constant 0 : index
    %c0_43 = arith.constant 0 : index
    %c0_44 = arith.constant 0 : index
    %72 = vector.load %arg7[%c0_42, %c0_43, %c0_44] : memref<4x1x128xf32, #tpu.memory_space<vmem>>, vector<4x1x128xf32>
    tpu.vector_store %arg7[%c0_42, %c0_43, %c0_44], %71 {strides = array<i32>} : memref<4x1x128xf32, #tpu.memory_space<vmem>>, vector<4x1x128xf32>,
    return
  }
  func.func @transform_0(%arg0: i32) -> (i32, i32, i32) {
    %c0_i32 = arith.constant 0 : i32
    %c0_i32_0 = arith.constant 0 : i32
    %c0_i32_1 = arith.constant 0 : i32
    return %arg0, %c0_i32, %c0_i32_0 : i32, i32, i32
  }
  func.func @transform_1(%arg0: i32) -> (i32, i32, i32) {
    %c0_i32 = arith.constant 0 : i32
    %c0_i32_0 = arith.constant 0 : i32
    %c0_i32_1 = arith.constant 0 : i32
    return %arg0, %c0_i32, %c0_i32_0 : i32, i32, i32
  }
  func.func @transform_2(%arg0: i32) -> (i32, i32, i32) {
    %c0_i32 = arith.constant 0 : i32
    %c0_i32_0 = arith.constant 0 : i32
    %c0_i32_1 = arith.constant 0 : i32
    return %arg0, %c0_i32, %c0_i32_0 : i32, i32, i32
  }
  func.func @transform_3(%arg0: i32) -> (i32, i32) {
    %c0_i32 = arith.constant 0 : i32
    %c0_i32_0 = arith.constant 0 : i32
    %c0_i32_1 = arith.constant 0 : i32
    return %c0_i32, %c0_i32_0 : i32, i32
  }
  func.func @transform_4(%arg0: i32) -> (i32, i32, i32) {
    %c0_i32 = arith.constant 0 : i32
    %c0_i32_0 = arith.constant 0 : i32
    %c0_i32_1 = arith.constant 0 : i32
    %c0_i32_2 = arith.constant 0 : i32
    return %c0_i32, %c0_i32_0, %c0_i32_1 : i32, i32, i32
  }
  func.func @transform_5(%arg0: i32) -> (i32, i32, i32) {
    %c0_i32 = arith.constant 0 : i32
    %c0_i32_0 = arith.constant 0 : i32
    %c0_i32_1 = arith.constant 0 : i32
    %c0_i32_2 = arith.constant 0 : i32
    return %c0_i32, %c0_i32_0, %c0_i32_1 : i32, i32, i32
  }
  func.func @transform_6(%arg0: i32) -> (i32, i32, i32) {
    %c0_i32 = arith.constant 0 : i32
    %c0_i32_0 = arith.constant 0 : i32
    %c0_i32_1 = arith.constant 0 : i32
    return %arg0, %c0_i32, %c0_i32_0 : i32, i32, i32
  }
}

</mosaic_0001>

<llo_original>
// kernel: tpu_custom_call.1
$region0: #{tpu_custom_call.1}
  #allocation0 [shape = 'u32[]', space=smem, size = 0x4, offset = 0x4, fixed_abs, tag = 'smem constant byte address 0x4 - core index']
  #allocation1 [shape = 'u32[144,128]{1,0:T(1,128)}', space=vmem, size = 0x12000, scoped, tag = 'internal scratch']
  %s0 = inlined_call_operand.vmem [shape: bf16[8,8,32], index: 0, kind: input, shape index: {}]
  %s1 = inlined_call_operand.vmem [shape: f32[8,8,1], index: 1, kind: input, shape index: {}]
  %s2 = inlined_call_operand.vmem [shape: f32[8,1,8], index: 2, kind: input, shape index: {}]
  %s3 = inlined_call_operand.vmem [shape: f32[32,128], index: 3, kind: input, shape index: {}]
  %s4 = inlined_call_operand.hbm [shape: f32[2,128,128], index: 4, kind: input, shape index: {}]
  %s5 = inlined_call_operand.vmem [shape: f32[3,1,128], index: 5, kind: input, shape index: {}]
  %s6 = inlined_call_operand.hbm [shape: f32[8,1,128], index: 6, kind: output, shape index: {}]
  %s7 = sld [smem:[#allocation0]]
  $region61: #{tpu_custom_call.1} parent=0
    _
  %s9 = ssub.s32 1, %s7
  %s10 = scalar_select 0, %s9, %s7
  $region1: #{tpu_custom_call.1} parent=0
    #allocation2 [shape = 'u8[131072]{0}', space=vmem, size = 0x20000, scoped, tag = 'input window, operand 4, single buffered']
    #allocation3 [shape = 's32[2]{0}', space=sflag, size = 0x8, scoped, tag = 'scoped memory for tpu_custom_call.1']
    #allocation4 [shape = 's32[2]{0}', space=sflag, size = 0x8, scoped, tag = 'scoped memory for tpu_custom_call.1']
    #allocation5 [shape = 'u8[4096]{0}', space=vmem, size = 0x1000, scoped, tag = 'output window, operand 0']
    %11 = vsyncpa [#allocation3], 0
    %12 = vsyncpa [#allocation4], 0
    %s13 = scalar_lea.sflag [#allocation4], 1
    %14 = vsyncpa %s13, 0
    loop: start=0, step=1, limit=4
    $region2: #{tpu_custom_call.1} parent=1 // loop_pre_header
      _
    $region3: #{tpu_custom_call.1} parent=1 // loop_header
      %s16 = sphi 0, %s20
      %p17 = scmp.ge.s32.totalorder %s16, 4
      %s26 = sphi 0, %s28
      %s29 = sphi 0, %s26
      %s30 = sphi 0, %s29
      %s46 = sphi 0, %s30
      %s52 = sphi 0, %s54
      %s55 = sphi 0, %s52
      %s56 = sphi 0, %s55
      %s72 = sphi 0, %s56
      %s78 = sphi 0, %s80
      %s81 = sphi 0, %s78
      %s82 = sphi 0, %s81
      %s98 = sphi 0, %s82
      %s102 = sphi 0, %s102
      %s104 = sphi 0, %s102
      %s105 = sphi 0, %s104
      %s119 = sphi 0, %s105
      %s123 = sphi 0, %s123
      %s125 = sphi 0, %s123
      %s126 = sphi 0, %s125
      %s140 = sphi 0, %s126
      %s144 = sphi 0, %s144
      %s146 = sphi 0, %s144
      %s147 = sphi 0, %s146
      %s161 = sphi 0, %s147
      %s167 = sphi 0, %s169
      %s170 = sphi 0, %s167
      %s171 = sphi 0, %s170
      %s187 = sphi 0, %s171
    $region4: #{tpu_custom_call.1} parent=1 // loop_header_branch
      %19 = sbr.rel (%p17) target = $region8
    $region5: #{tpu_custom_call.1} parent=1 // loop_body
      %s21 = ssub.s32 %s16, 1
      %s22 = ssub.s32 %s16, 2
      %s23 = sadd.s32 %s16, 1
      %s24 = ssub.s32 %s16, %s23
      %p25 = scmp.eq.s32.totalorder %s24, 0
      %s27 = sadd.s32 %s26, 1
      %s28 = scalar_select %p25, %s26, %s27
      %p31 = pneg %p25
      %p32 = scmp.eq.s32.totalorder %s16, 1
      %p33 = por %p31, %p32
      %p34 = scmp.ne.s32.totalorder %s26, %s29
      %p35 = scmp.eq.s32.totalorder %s16, 0
      %p36 = por %p34, %p35
      %p37 = scmp.ne.s32.totalorder %s26, %s29
      %p38 = scmp.eq.s32.totalorder %s21, 1
      %p39 = por %p37, %p38
      %p40 = scmp.ne.s32.totalorder %s29, %s30
      %p41 = scmp.eq.s32.totalorder %s21, 0
      %p42 = por %p40, %p41
      %p43 = scmp.ne.s32.totalorder %s29, %s30
      %p44 = scmp.eq.s32.totalorder %s22, 1
      %p45 = por %p43, %p44
      %p47 = scmp.ne.s32.totalorder %s30, %s46
      %p48 = scmp.eq.s32.totalorder %s22, 0
      %p49 = por %p47, %p48
      %s50 = ssub.s32 %s16, %s23
      %p51 = scmp.eq.s32.totalorder %s50, 0
      %s53 = sadd.s32 %s52, 1
      %s54 = scalar_select %p51, %s52, %s53
      %p57 = pneg %p51
      %p58 = scmp.eq.s32.totalorder %s16, 1
      %p59 = por %p57, %p58
      %p60 = scmp.ne.s32.totalorder %s52, %s55
      %p61 = scmp.eq.s32.totalorder %s16, 0
      %p62 = por %p60, %p61
      %p63 = scmp.ne.s32.totalorder %s52, %s55
      %p64 = scmp.eq.s32.totalorder %s21, 1
      %p65 = por %p63, %p64
      %p66 = scmp.ne.s32.totalorder %s55, %s56
      %p67 = scmp.eq.s32.totalorder %s21, 0
      %p68 = por %p66, %p67
      %p69 = scmp.ne.s32.totalorder %s55, %s56
      %p70 = scmp.eq.s32.totalorder %s22, 1
      %p71 = por %p69, %p70
      %p73 = scmp.ne.s32.totalorder %s56, %s72
      %p74 = scmp.eq.s32.totalorder %s22, 0
      %p75 = por %p73, %p74
      %s76 = ssub.s32 %s16, %s23
      %p77 = scmp.eq.s32.totalorder %s76, 0
      %s79 = sadd.s32 %s78, 1
      %s80 = scalar_select %p77, %s78, %s79
      %p83 = pneg %p77
      %p84 = scmp.eq.s32.totalorder %s16, 1
      %p85 = por %p83, %p84
      %p86 = scmp.ne.s32.totalorder %s78, %s81
      %p87 = scmp.eq.s32.totalorder %s16, 0
      %p88 = por %p86, %p87
      %p89 = scmp.ne.s32.totalorder %s78, %s81
      %p90 = scmp.eq.s32.totalorder %s21, 1
      %p91 = por %p89, %p90
      %p92 = scmp.ne.s32.totalorder %s81, %s82
      %p93 = scmp.eq.s32.totalorder %s21, 0
      %p94 = por %p92, %p93
      %p95 = scmp.ne.s32.totalorder %s81, %s82
      %p96 = scmp.eq.s32.totalorder %s22, 1
      %p97 = por %p95, %p96
      %p99 = scmp.ne.s32.totalorder %s82, %s98
      %p100 = scmp.eq.s32.totalorder %s22, 0
      %p101 = por %p99, %p100
      %s103 = sadd.s32 %s102, 1
      %p106 = scmp.eq.s32.totalorder %s16, 1
      %p107 = scmp.ne.s32.totalorder %s102, %s104
      %p108 = scmp.eq.s32.totalorder %s16, 0
      %p109 = por %p107, %p108
      %p110 = scmp.ne.s32.totalorder %s102, %s104
      %p111 = scmp.eq.s32.totalorder %s21, 1
      %p112 = por %p110, %p111
      %p113 = scmp.ne.s32.totalorder %s104, %s105
      %p114 = scmp.eq.s32.totalorder %s21, 0
      %p115 = por %p113, %p114
      %p116 = scmp.ne.s32.totalorder %s104, %s105
      %p117 = scmp.eq.s32.totalorder %s22, 1
      %p118 = por %p116, %p117
      %p120 = scmp.ne.s32.totalorder %s105, %s119
      %p121 = scmp.eq.s32.totalorder %s22, 0
      %p122 = por %p120, %p121
      %s124 = sadd.s32 %s123, 1
      %p127 = scmp.eq.s32.totalorder %s16, 1
      %p128 = scmp.ne.s32.totalorder %s123, %s125
      %p129 = scmp.eq.s32.totalorder %s16, 0
      %p130 = por %p128, %p129
      %p131 = scmp.ne.s32.totalorder %s123, %s125
      %p132 = scmp.eq.s32.totalorder %s21, 1
      %p133 = por %p131, %p132
      %p134 = scmp.ne.s32.totalorder %s125, %s126
      %p135 = scmp.eq.s32.totalorder %s21, 0
      %p136 = por %p134, %p135
      %p137 = scmp.ne.s32.totalorder %s125, %s126
      %p138 = scmp.eq.s32.totalorder %s22, 1
      %p139 = por %p137, %p138
      %p141 = scmp.ne.s32.totalorder %s126, %s140
      %p142 = scmp.eq.s32.totalorder %s22, 0
      %p143 = por %p141, %p142
      %s145 = sadd.s32 %s144, 1
      %p148 = scmp.eq.s32.totalorder %s16, 1
      %p149 = scmp.ne.s32.totalorder %s144, %s146
      %p150 = scmp.eq.s32.totalorder %s16, 0
      %p151 = por %p149, %p150
      %p152 = scmp.ne.s32.totalorder %s144, %s146
      %p153 = scmp.eq.s32.totalorder %s21, 1
      %p154 = por %p152, %p153
      %p155 = scmp.ne.s32.totalorder %s146, %s147
      %p156 = scmp.eq.s32.totalorder %s21, 0
      %p157 = por %p155, %p156
      %p158 = scmp.ne.s32.totalorder %s146, %s147
      %p159 = scmp.eq.s32.totalorder %s22, 1
      %p160 = por %p158, %p159
      %p162 = scmp.ne.s32.totalorder %s147, %s161
      %p163 = scmp.eq.s32.totalorder %s22, 0
      %p164 = por %p162, %p163
      %s165 = ssub.s32 %s16, %s23
      %p166 = scmp.eq.s32.totalorder %s165, 0
      %s168 = sadd.s32 %s167, 1
      %s169 = scalar_select %p166, %s167, %s168
      %p172 = pneg %p166
      %p173 = scmp.eq.s32.totalorder %s16, 1
      %p174 = por %p172, %p173
      %p175 = scmp.ne.s32.totalorder %s167, %s170
      %p176 = scmp.eq.s32.totalorder %s16, 0
      %p177 = por %p175, %p176
      %p178 = scmp.ne.s32.totalorder %s167, %s170
      %p179 = scmp.eq.s32.totalorder %s21, 1
      %p180 = por %p178, %p179
      %p181 = scmp.ne.s32.totalorder %s170, %s171
      %p182 = scmp.eq.s32.totalorder %s21, 0
      %p183 = por %p181, %p182
      %p184 = scmp.ne.s32.totalorder %s170, %s171
      %p185 = scmp.eq.s32.totalorder %s22, 1
      %p186 = por %p184, %p185
      %p188 = scmp.ne.s32.totalorder %s171, %s187
      %p189 = scmp.eq.s32.totalorder %s22, 0
      %p190 = por %p188, %p189
      %p191 = scmp.le.s32.totalorder 1, %s16
      %p192 = scmp.lt.s32.totalorder %s16, 3
      %p193 = pnand %p191, %p192
      %p194 = pneg %p193
      // Predicated region
      $region9: #{tpu_custom_call.1} parent=5 // pred_check
        _
      $region10: #{tpu_custom_call.1} parent=5 // pred_check_branch
        %196 = sbr.rel (%p193) target = $region12
      $region11: #{tpu_custom_call.1} parent=5 // pred_region
        %s197 = ssub.s32 %s16, 1
        // Predicated region
        $region13: #{tpu_custom_call.1} parent=11 // pred_check
          %p198 = pneg %p115
        $region14: #{tpu_custom_call.1} parent=11 // pred_check_branch
          %200 = sbr.rel (%p198) target = $region16
        $region15: #{tpu_custom_call.1} parent=11 // pred_region
          _
        $region16: #{tpu_custom_call.1} parent=11 // pred_fallthru
          _
        // Predicated region
        $region17: #{tpu_custom_call.1} parent=11 // pred_check
          %p201 = pneg %p136
        $region18: #{tpu_custom_call.1} parent=11 // pred_check_branch
          %203 = sbr.rel (%p201) target = $region20
        $region19: #{tpu_custom_call.1} parent=11 // pred_region
          %s205 = ssub.s32 4096, 4096
          %206 = vsyncadd [#allocation3], %s205
          %s207 = sshll.u32 [#allocation2], 4
          %s208 = int_to_ptr.vmem [resolvable:$true] %s207
          %213 = dma.hbm_to_vmem [thread:$0]  %s4, 4096, %s208, [#allocation3], 128, 128, 8
        $region20: #{tpu_custom_call.1} parent=11 // pred_fallthru
          _
        // Predicated region
        $region21: #{tpu_custom_call.1} parent=11 // pred_check
          %p214 = pneg %p157
        $region22: #{tpu_custom_call.1} parent=11 // pred_check_branch
          %216 = sbr.rel (%p214) target = $region24
        $region23: #{tpu_custom_call.1} parent=11 // pred_region
          _
        $region24: #{tpu_custom_call.1} parent=11 // pred_fallthru
          _
      $region12: #{tpu_custom_call.1} parent=5 // pred_fallthru
        _
      %p217 = scmp.lt.s32.totalorder %s16, 2
      // Predicated region
      $region25: #{tpu_custom_call.1} parent=5 // pred_check
        %p218 = pneg %p217
      $region26: #{tpu_custom_call.1} parent=5 // pred_check_branch
        %220 = sbr.rel (%p218) target = $region28
      $region27: #{tpu_custom_call.1} parent=5 // pred_region
        // Predicated region
        $region29: #{tpu_custom_call.1} parent=27 // pred_check
          %p221 = pneg %p36
        $region30: #{tpu_custom_call.1} parent=27 // pred_check_branch
          %223 = sbr.rel (%p221) target = $region32
        $region31: #{tpu_custom_call.1} parent=27 // pred_region
          %s224 = smul.u32 4, %s16
          %p225 = scmp.lt.s32.totalorder %s224, 7
          %s226 = scalar_select %p225, %s224, 7
          %s227 = smul.addr %s226, 4
          %s228 = scalar_lea.vmem %s0, %s227
          %s229 = smul.u32 4, %s16
        $region32: #{tpu_custom_call.1} parent=27 // pred_fallthru
          _
        // Predicated region
        $region33: #{tpu_custom_call.1} parent=27 // pred_check
          %p230 = pneg %p62
        $region34: #{tpu_custom_call.1} parent=27 // pred_check_branch
          %232 = sbr.rel (%p230) target = $region36
        $region35: #{tpu_custom_call.1} parent=27 // pred_region
          %s233 = smul.u32 4, %s16
          %p234 = scmp.lt.s32.totalorder %s233, 7
          %s235 = scalar_select %p234, %s233, 7
          %s236 = smul.addr %s235, 8
          %s237 = scalar_lea.vmem %s1, %s236
          %s238 = smul.u32 4, %s16
        $region36: #{tpu_custom_call.1} parent=27 // pred_fallthru
          _
        // Predicated region
        $region37: #{tpu_custom_call.1} parent=27 // pred_check
          %p239 = pneg %p88
        $region38: #{tpu_custom_call.1} parent=27 // pred_check_branch
          %241 = sbr.rel (%p239) target = $region40
        $region39: #{tpu_custom_call.1} parent=27 // pred_region
          %s242 = smul.u32 4, %s16
          %p243 = scmp.lt.s32.totalorder %s242, 7
          %s244 = scalar_select %p243, %s242, 7
          %s245 = scalar_lea.vmem %s2, %s244
          %s246 = smul.u32 4, %s16
        $region40: #{tpu_custom_call.1} parent=27 // pred_fallthru
          _
      $region28: #{tpu_custom_call.1} parent=5 // pred_fallthru
        _
      %p247 = scmp.le.s32.totalorder 1, %s16
      %p248 = scmp.lt.s32.totalorder %s16, 3
      %p249 = pnand %p247, %p248
      %p250 = pneg %p249
      // Predicated region
      $region41: #{tpu_custom_call.1} parent=5 // pred_check
        _
      $region42: #{tpu_custom_call.1} parent=5 // pred_check_branch
        %252 = sbr.rel (%p249) target = $region44
      $region43: #{tpu_custom_call.1} parent=5 // pred_region
        %s253 = ssub.s32 %s16, 1
        // Predicated region
        $region45: #{tpu_custom_call.1} parent=43 // pred_check
          %p254 = pneg %p136
        $region46: #{tpu_custom_call.1} parent=43 // pred_check_branch
          %256 = sbr.rel (%p254) target = $region48
        $region47: #{tpu_custom_call.1} parent=43 // pred_region
          %257 = dma.done [#allocation3], 4096
        $region48: #{tpu_custom_call.1} parent=43 // pred_fallthru
          _
        %s258 = smul.u32 4, %s21
        %p259 = scmp.lt.s32.totalorder %s258, 7
        %s260 = scalar_select %p259, %s258, 7
        %s261 = smul.addr %s260, 4
        %s262 = scalar_lea.vmem %s0, %s261
        %p263 = pneg %p42
        %p264 = pneg %p39
        %s265 = smul.u32 4, %s21
        %p266 = scmp.lt.s32.totalorder %s265, 7
        %s267 = scalar_select %p266, %s265, 7
        %s268 = smul.addr %s267, 8
        %s269 = scalar_lea.vmem %s1, %s268
        %p270 = pneg %p68
        %p271 = pneg %p65
        %s272 = smul.u32 4, %s21
        %p273 = scmp.lt.s32.totalorder %s272, 7
        %s274 = scalar_select %p273, %s272, 7
        %s275 = scalar_lea.vmem %s2, %s274
        %p276 = pneg %p94
        %p277 = pneg %p91
        %p278 = pneg %p115
        %p279 = pneg %p112
        %p280 = pneg %p136
        %p281 = pneg %p133
        %p282 = pneg %p157
        %p283 = pneg %p154
        %p284 = pneg %p183
        %p285 = pneg %p180
        %s286 = sand.u32 %s170, 1
        %s287 = scalar_lea.sflag [#allocation4], %s286
        %s288 = sand.u32 %s170, 1
        %s289 = smul.addr %s288, 4
        %s290 = scalar_lea.vmem [#allocation5], %s289
        %s291 = smul.u32 4, %s21
        %p292 = scmp.lt.s32.totalorder %s291, 7
        %s293 = scalar_select %p292, %s291, 7
        %s294 = smul.addr %s293, 4
        %s295 = scalar_lea.vmem %s0, %s294
        %s296 = smul.u32 4, %s21
        %s297 = smul.u32 4, %s21
        %p298 = scmp.lt.s32.totalorder %s297, 7
        %s299 = scalar_select %p298, %s297, 7
        %s300 = smul.addr %s299, 8
        %s301 = scalar_lea.vmem %s1, %s300
        %s302 = smul.u32 4, %s21
        %s303 = smul.u32 4, %s21
        %p304 = scmp.lt.s32.totalorder %s303, 7
        %s305 = scalar_select %p304, %s303, 7
        %s306 = scalar_lea.vmem %s2, %s305
        %s307 = smul.u32 4, %s21
        %s308 = smul.u32 4, %s21
        %v310 = vld [vmem:[%s295] sm:$0xf]
        %v311 = vld [vmem:[%s295 + $0x4] sm:$0xf]
        %v312 = vld [vmem:[%s295 + $0x8] sm:$0xf]
        %v313 = vld [vmem:[%s295 + $0xc] sm:$0xf]
        %v314 = vld [vmem:[%s301] sm:$0xff]
        %v315 = vld [vmem:[%s301 + $0x8] sm:$0xff]
        %v316 = vld [vmem:[%s301 + $0x10] sm:$0xff]
        %v317 = vld [vmem:[%s301 + $0x18] sm:$0xff]
        %vm318 = vcmp.gt.f32.partialorder %v314, 0.0
        %vm319 = vcmp.gt.f32.partialorder %v315, 0.0
        %vm320 = vcmp.gt.f32.partialorder %v316, 0.0
        %vm321 = vcmp.gt.f32.partialorder %v317, 0.0
        %v322 = vld [vmem:[%s306] sm:$0x1]
        %v323 = vld [vmem:[%s306 + $0x1] sm:$0x1]
        %v324 = vld [vmem:[%s306 + $0x2] sm:$0x1]
        %v325 = vld [vmem:[%s306 + $0x3] sm:$0x1]
        %vm326 = vcmp.gt.f32.partialorder %v322, 0.0
        %vm327 = vcmp.gt.f32.partialorder %v323, 0.0
        %vm328 = vcmp.gt.f32.partialorder %v324, 0.0
        %vm329 = vcmp.gt.f32.partialorder %v325, 0.0
        %v330 = vsel %vm318, 1, 0
        %v331 = vsel %vm319, 1, 0
        %v332 = vsel %vm320, 1, 0
        %v333 = vsel %vm321, 1, 0
        %334 = vset.pattern.permute.xlu0 0
        %335 = vperm.xlu0 %334, %v330
        %v336 = vpop.permute.xlu0 %335
        %337 = vset.pattern.permute.xlu0 0
        %338 = vperm.xlu0 %337, %v331
        %v339 = vpop.permute.xlu0 %338
        %340 = vset.pattern.permute.xlu0 0
        %341 = vperm.xlu0 %340, %v332
        %v342 = vpop.permute.xlu0 %341
        %343 = vset.pattern.permute.xlu0 0
        %344 = vperm.xlu0 %343, %v333
        %v345 = vpop.permute.xlu0 %344
        %vm346 = vcmp.eq.s32.totalorder %v336, 1
        %vm347 = vcmp.eq.s32.totalorder %v339, 1
        %vm348 = vcmp.eq.s32.totalorder %v342, 1
        %vm349 = vcmp.eq.s32.totalorder %v345, 1
        %v350 = vsel %vm326, 1, 0
        %v351 = vsel %vm327, 1, 0
        %v352 = vsel %vm328, 1, 0
        %v353 = vsel %vm329, 1, 0
        %v354 = vlaneseq
        %v355 = vshrl.u32 %v354, 7
        %v356 = vsub.s32 0, %v355
        %v357 = vrot.slane %v350, %v356
        %v358 = vlaneseq
        %v359 = vshrl.u32 %v358, 7
        %v360 = vsub.s32 0, %v359
        %v361 = vrot.slane %v351, %v360
        %v362 = vlaneseq
        %v363 = vshrl.u32 %v362, 7
        %v364 = vsub.s32 0, %v363
        %v365 = vrot.slane %v352, %v364
        %v366 = vlaneseq
        %v367 = vshrl.u32 %v366, 7
        %v368 = vsub.s32 0, %v367
        %v369 = vrot.slane %v353, %v368
        %vm370 = vcmp.eq.s32.totalorder %v357, 1
        %vm371 = vcmp.eq.s32.totalorder %v361, 1
        %vm372 = vcmp.eq.s32.totalorder %v365, 1
        %vm373 = vcmp.eq.s32.totalorder %v369, 1
        %vm374 = vmor %vm346, %vm370
        %vm375 = vmor %vm347, %vm371
        %vm376 = vmor %vm348, %vm372
        %vm377 = vmor %vm349, %vm373
        %vm378 = vcmask 261120
        %v380 = vsel %vm378, %v310, 0
        %382 = vmatprep.subr.bf16.mxu0 0
        %383 = vmatpush1.bf16.xpose.msra.mxu0 %v380
        %384 = vmatprep.subr.bf16.mxu0 0
        %385 = vmatpush1.bf16.xpose.msra.mxu0 0
        %386 = vmatprep.subr.bf16.mxu0 0
        %387 = vmatpush1.bf16.xpose.msra.mxu0 0
        %388 = vmatprep.subr.bf16.mxu0 0
        %389 = vmatpush1.bf16.xpose.msra.mxu0 0
        %390 = vmatprep.subr.bf16.mxu0 0
        %391 = vmatpush1.bf16.xpose.msra.mxu0 0
        %392 = vmatprep.subr.bf16.mxu0 0
        %393 = vmatpush1.bf16.xpose.msra.mxu0 0
        %394 = vmatprep.subr.bf16.mxu0 0
        %395 = vmatpush1.bf16.xpose.msra.mxu0 0
        %396 = vmatprep.subr.bf16.mxu0 0
        %397 = vmatpush1.bf16.xpose.msra.mxu0 0
        %398 = vmatprep.subr.bf16.mxu0 0
        %399 = vmatpush1.bf16.xpose.msra.mxu0 0
        %400 = vmatprep.subr.bf16.mxu0 0
        %401 = vmatpush1.bf16.xpose.msra.mxu0 0
        %402 = vmatprep.subr.bf16.mxu0 0
        %403 = vmatpush1.bf16.xpose.msra.mxu0 0
        %404 = vmatprep.subr.bf16.mxu0 0
        %405 = vmatpush1.bf16.xpose.msra.mxu0 0
        %406 = vmatprep.subr.bf16.mxu0 0
        %407 = vmatpush1.bf16.xpose.msra.mxu0 0
        %408 = vmatprep.subr.bf16.mxu0 0
        %409 = vmatpush1.bf16.xpose.msra.mxu0 0
        %410 = vmatprep.subr.bf16.mxu0 0
        %411 = vmatpush1.bf16.xpose.msra.mxu0 0
        %412 = vmatprep.subr.bf16.mxu0 0
        %413 = vmatpush1.bf16.xpose.msra.mxu0 0
        %414 = vmatprep.mubr.bf16.mxu0 0
        %415 = vmatmul.mubr.bf16.gmra.mrb[0].mxu0 %v380
        %v416 = vpop.f32.mrb[0].mxu0
        %v417 = vadd.f32 0.0, %v416
        %v418 = vpop.f32.mrb[0].mxu0
        %v419 = vpop.f32.mrb[0].mxu0
        %v420 = vpop.f32.mrb[0].mxu0
        %421 = vdwg.mxu0
        %v423 = vsel %vm378, %v311, 0
        %425 = vmatprep.subr.bf16.mxu0 0
        %426 = vmatpush1.bf16.xpose.msra.mxu0 %v423
        %427 = vmatprep.subr.bf16.mxu0 0
        %428 = vmatpush1.bf16.xpose.msra.mxu0 0
        %429 = vmatprep.subr.bf16.mxu0 0
        %430 = vmatpush1.bf16.xpose.msra.mxu0 0
        %431 = vmatprep.subr.bf16.mxu0 0
        %432 = vmatpush1.bf16.xpose.msra.mxu0 0
        %433 = vmatprep.subr.bf16.mxu0 0
        %434 = vmatpush1.bf16.xpose.msra.mxu0 0
        %435 = vmatprep.subr.bf16.mxu0 0
        %436 = vmatpush1.bf16.xpose.msra.mxu0 0
        %437 = vmatprep.subr.bf16.mxu0 0
        %438 = vmatpush1.bf16.xpose.msra.mxu0 0
        %439 = vmatprep.subr.bf16.mxu0 0
        %440 = vmatpush1.bf16.xpose.msra.mxu0 0
        %441 = vmatprep.subr.bf16.mxu0 0
        %442 = vmatpush1.bf16.xpose.msra.mxu0 0
        %443 = vmatprep.subr.bf16.mxu0 0
        %444 = vmatpush1.bf16.xpose.msra.mxu0 0
        %445 = vmatprep.subr.bf16.mxu0 0
        %446 = vmatpush1.bf16.xpose.msra.mxu0 0
        %447 = vmatprep.subr.bf16.mxu0 0
        %448 = vmatpush1.bf16.xpose.msra.mxu0 0
        %449 = vmatprep.subr.bf16.mxu0 0
        %450 = vmatpush1.bf16.xpose.msra.mxu0 0
        %451 = vmatprep.subr.bf16.mxu0 0
        %452 = vmatpush1.bf16.xpose.msra.mxu0 0
        %453 = vmatprep.subr.bf16.mxu0 0
        %454 = vmatpush1.bf16.xpose.msra.mxu0 0
        %455 = vmatprep.subr.bf16.mxu0 0
        %456 = vmatpush1.bf16.xpose.msra.mxu0 0
        %457 = vmatprep.mubr.bf16.mxu0 0
        %458 = vmatmul.mubr.bf16.gmra.mrb[0].mxu0 %v423
        %v459 = vpop.f32.mrb[0].mxu0
        %v460 = vadd.f32 0.0, %v459
        %v461 = vpop.f32.mrb[0].mxu0
        %v462 = vpop.f32.mrb[0].mxu0
        %v463 = vpop.f32.mrb[0].mxu0
        %464 = vdwg.mxu0
        %v466 = vsel %vm378, %v312, 0
        %468 = vmatprep.subr.bf16.mxu0 0
        %469 = vmatpush1.bf16.xpose.msra.mxu0 %v466
        %470 = vmatprep.subr.bf16.mxu0 0
        %471 = vmatpush1.bf16.xpose.msra.mxu0 0
        %472 = vmatprep.subr.bf16.mxu0 0
        %473 = vmatpush1.bf16.xpose.msra.mxu0 0
        %474 = vmatprep.subr.bf16.mxu0 0
        %475 = vmatpush1.bf16.xpose.msra.mxu0 0
        %476 = vmatprep.subr.bf16.mxu0 0
        %477 = vmatpush1.bf16.xpose.msra.mxu0 0
        %478 = vmatprep.subr.bf16.mxu0 0
        %479 = vmatpush1.bf16.xpose.msra.mxu0 0
        %480 = vmatprep.subr.bf16.mxu0 0
        %481 = vmatpush1.bf16.xpose.msra.mxu0 0
        %482 = vmatprep.subr.bf16.mxu0 0
        %483 = vmatpush1.bf16.xpose.msra.mxu0 0
        %484 = vmatprep.subr.bf16.mxu0 0
        %485 = vmatpush1.bf16.xpose.msra.mxu0 0
        %486 = vmatprep.subr.bf16.mxu0 0
        %487 = vmatpush1.bf16.xpose.msra.mxu0 0
        %488 = vmatprep.subr.bf16.mxu0 0
        %489 = vmatpush1.bf16.xpose.msra.mxu0 0
        %490 = vmatprep.subr.bf16.mxu0 0
        %491 = vmatpush1.bf16.xpose.msra.mxu0 0
        %492 = vmatprep.subr.bf16.mxu0 0
        %493 = vmatpush1.bf16.xpose.msra.mxu0 0
        %494 = vmatprep.subr.bf16.mxu0 0
        %495 = vmatpush1.bf16.xpose.msra.mxu0 0
        %496 = vmatprep.subr.bf16.mxu0 0
        %497 = vmatpush1.bf16.xpose.msra.mxu0 0
        %498 = vmatprep.subr.bf16.mxu0 0
        %499 = vmatpush1.bf16.xpose.msra.mxu0 0
        %500 = vmatprep.mubr.bf16.mxu0 0
        %501 = vmatmul.mubr.bf16.gmra.mrb[0].mxu0 %v466
        %v502 = vpop.f32.mrb[0].mxu0
        %v503 = vadd.f32 0.0, %v502
        %v504 = vpop.f32.mrb[0].mxu0
        %v505 = vpop.f32.mrb[0].mxu0
        %v506 = vpop.f32.mrb[0].mxu0
        %507 = vdwg.mxu0
        %v509 = vsel %vm378, %v313, 0
        %511 = vmatprep.subr.bf16.mxu0 0
        %512 = vmatpush1.bf16.xpose.msra.mxu0 %v509
        %513 = vmatprep.subr.bf16.mxu0 0
        %514 = vmatpush1.bf16.xpose.msra.mxu0 0
        %515 = vmatprep.subr.bf16.mxu0 0
        %516 = vmatpush1.bf16.xpose.msra.mxu0 0
        %517 = vmatprep.subr.bf16.mxu0 0
        %518 = vmatpush1.bf16.xpose.msra.mxu0 0
        %519 = vmatprep.subr.bf16.mxu0 0
        %520 = vmatpush1.bf16.xpose.msra.mxu0 0
        %521 = vmatprep.subr.bf16.mxu0 0
        %522 = vmatpush1.bf16.xpose.msra.mxu0 0
        %523 = vmatprep.subr.bf16.mxu0 0
        %524 = vmatpush1.bf16.xpose.msra.mxu0 0
        %525 = vmatprep.subr.bf16.mxu0 0
        %526 = vmatpush1.bf16.xpose.msra.mxu0 0
        %527 = vmatprep.subr.bf16.mxu0 0
        %528 = vmatpush1.bf16.xpose.msra.mxu0 0
        %529 = vmatprep.subr.bf16.mxu0 0
        %530 = vmatpush1.bf16.xpose.msra.mxu0 0
        %531 = vmatprep.subr.bf16.mxu0 0
        %532 = vmatpush1.bf16.xpose.msra.mxu0 0
        %533 = vmatprep.subr.bf16.mxu0 0
        %534 = vmatpush1.bf16.xpose.msra.mxu0 0
        %535 = vmatprep.subr.bf16.mxu0 0
        %536 = vmatpush1.bf16.xpose.msra.mxu0 0
        %537 = vmatprep.subr.bf16.mxu0 0
        %538 = vmatpush1.bf16.xpose.msra.mxu0 0
        %539 = vmatprep.subr.bf16.mxu0 0
        %540 = vmatpush1.bf16.xpose.msra.mxu0 0
        %541 = vmatprep.subr.bf16.mxu0 0
        %542 = vmatpush1.bf16.xpose.msra.mxu0 0
        %543 = vmatprep.mubr.bf16.mxu0 0
        %544 = vmatmul.mubr.bf16.gmra.mrb[0].mxu0 %v509
        %v545 = vpop.f32.mrb[0].mxu0
        %v546 = vadd.f32 0.0, %v545
        %v547 = vpop.f32.mrb[0].mxu0
        %v548 = vpop.f32.mrb[0].mxu0
        %v549 = vpop.f32.mrb[0].mxu0
        %550 = vdwg.mxu0
        %v551 = vmul.f32 %v417, 0.17677669
        %v552 = vmul.f32 %v460, 0.17677669
        %v553 = vmul.f32 %v503, 0.17677669
        %v554 = vmul.f32 %v546, 0.17677669
        %v555 = vsel %vm374, -1e+30, %v551
        %v556 = vsel %vm375, -1e+30, %v552
        %v557 = vsel %vm376, -1e+30, %v553
        %v558 = vsel %vm377, -1e+30, %v554
        %vm559 = vcmask 64512
        %v560 = vsel %vm559, %v555, -inf
        %561 = vmax.xlane.f32.xlu0 %v560
        %v562 = vpop.xlane.xlu0 %561
        %v563 = vsel %vm559, %v556, -inf
        %564 = vmax.xlane.f32.xlu0 %v563
        %v565 = vpop.xlane.xlu0 %564
        %v566 = vsel %vm559, %v557, -inf
        %567 = vmax.xlane.f32.xlu0 %v566
        %v568 = vpop.xlane.xlu0 %567
        %v569 = vsel %vm559, %v558, -inf
        %570 = vmax.xlane.f32.xlu0 %v569
        %v571 = vpop.xlane.xlu0 %570
        %v572 = vsub.f32 %v555, %v562
        %v573 = vsub.f32 %v556, %v565
        %v574 = vsub.f32 %v557, %v568
        %v575 = vsub.f32 %v558, %v571
        %v576 = vmul.f32 %v572, 1.442695
        %v577 = vpow.pop %v576
        %v578 = vmul.f32 %v573, 1.442695
        %v579 = vpow.pop %v578
        %v580 = vmul.f32 %v574, 1.442695
        %v581 = vpow.pop %v580
        %v582 = vmul.f32 %v575, 1.442695
        %v583 = vpow.pop %v582
        %v584 = vsel %vm559, %v577, 0.0
        %585 = vadd.xlane.f32.xlu0 %v584
        %v586 = vpop.xlane.xlu0 %585
        %v587 = vsel %vm559, %v579, 0.0
        %588 = vadd.xlane.f32.xlu0 %v587
        %v589 = vpop.xlane.xlu0 %588
        %v590 = vsel %vm559, %v581, 0.0
        %591 = vadd.xlane.f32.xlu0 %v590
        %v592 = vpop.xlane.xlu0 %591
        %v593 = vsel %vm559, %v583, 0.0
        %594 = vadd.xlane.f32.xlu0 %v593
        %v595 = vpop.xlane.xlu0 %594
        %v596 = vrcp.pop %v586
        %v597 = vmul.f32 %v577, %v596
        %v598 = vrcp.pop %v589
        %v599 = vmul.f32 %v579, %v598
        %v600 = vrcp.pop %v592
        %v601 = vmul.f32 %v581, %v600
        %v602 = vrcp.pop %v595
        %v603 = vmul.f32 %v583, %v602
        %v604 = vsel %vm374, 0.0, %v597
        %v605 = vsel %vm375, 0.0, %v599
        %v606 = vsel %vm376, 0.0, %v601
        %v607 = vsel %vm377, 0.0, %v603
        %v608 = vpack.c.bf16 %v604, %v604
        %v609 = vpack.c.bf16 %v605, %v605
        %v610 = vpack.c.bf16 %v606, %v606
        %v611 = vpack.c.bf16 %v607, %v607
        %v613 = vsel %vm559, %v608, 0
        %vm615 = vcmask 1043456
        %v616 = vsel %vm615, %v310, 0
        %618 = vmatprep.subr.bf16.mxu0 0
        %619 = vmatpush1.bf16.msra.mxu0 %v616
        %620 = vmatprep.subr.bf16.mxu0 0
        %621 = vmatpush1.bf16.msra.mxu0 0
        %622 = vmatprep.subr.bf16.mxu0 0
        %623 = vmatpush1.bf16.msra.mxu0 0
        %624 = vmatprep.subr.bf16.mxu0 0
        %625 = vmatpush1.bf16.msra.mxu0 0
        %626 = vmatprep.subr.bf16.mxu0 0
        %627 = vmatpush1.bf16.msra.mxu0 0
        %628 = vmatprep.subr.bf16.mxu0 0
        %629 = vmatpush1.bf16.msra.mxu0 0
        %630 = vmatprep.subr.bf16.mxu0 0
        %631 = vmatpush1.bf16.msra.mxu0 0
        %632 = vmatprep.subr.bf16.mxu0 0
        %633 = vmatpush1.bf16.msra.mxu0 0
        %634 = vmatprep.subr.bf16.mxu0 0
        %635 = vmatpush1.bf16.msra.mxu0 0
        %636 = vmatprep.subr.bf16.mxu0 0
        %637 = vmatpush1.bf16.msra.mxu0 0
        %638 = vmatprep.subr.bf16.mxu0 0
        %639 = vmatpush1.bf16.msra.mxu0 0
        %640 = vmatprep.subr.bf16.mxu0 0
        %641 = vmatpush1.bf16.msra.mxu0 0
        %642 = vmatprep.subr.bf16.mxu0 0
        %643 = vmatpush1.bf16.msra.mxu0 0
        %644 = vmatprep.subr.bf16.mxu0 0
        %645 = vmatpush1.bf16.msra.mxu0 0
        %646 = vmatprep.subr.bf16.mxu0 0
        %647 = vmatpush1.bf16.msra.mxu0 0
        %648 = vmatprep.subr.bf16.mxu0 0
        %649 = vmatpush1.bf16.msra.mxu0 0
        %650 = vmatprep.mubr.bf16.mxu0 0
        %651 = vmatmul.mubr.bf16.gmra.mrb[0].mxu0 %v613
        %v652 = vpop.f32.mrb[0].mxu0
        %v653 = vadd.f32 0.0, %v652
        %v654 = vpop.f32.mrb[0].mxu0
        %v655 = vpop.f32.mrb[0].mxu0
        %v656 = vpop.f32.mrb[0].mxu0
        %657 = vdwg.mxu0
        %v659 = vsel %vm559, %v609, 0
        %v661 = vsel %vm615, %v311, 0
        %663 = vmatprep.subr.bf16.mxu0 0
        %664 = vmatpush1.bf16.msra.mxu0 %v661
        %665 = vmatprep.subr.bf16.mxu0 0
        %666 = vmatpush1.bf16.msra.mxu0 0
        %667 = vmatprep.subr.bf16.mxu0 0
        %668 = vmatpush1.bf16.msra.mxu0 0
        %669 = vmatprep.subr.bf16.mxu0 0
        %670 = vmatpush1.bf16.msra.mxu0 0
        %671 = vmatprep.subr.bf16.mxu0 0
        %672 = vmatpush1.bf16.msra.mxu0 0
        %673 = vmatprep.subr.bf16.mxu0 0
        %674 = vmatpush1.bf16.msra.mxu0 0
        %675 = vmatprep.subr.bf16.mxu0 0
        %676 = vmatpush1.bf16.msra.mxu0 0
        %677 = vmatprep.subr.bf16.mxu0 0
        %678 = vmatpush1.bf16.msra.mxu0 0
        %679 = vmatprep.subr.bf16.mxu0 0
        %680 = vmatpush1.bf16.msra.mxu0 0
        %681 = vmatprep.subr.bf16.mxu0 0
        %682 = vmatpush1.bf16.msra.mxu0 0
        %683 = vmatprep.subr.bf16.mxu0 0
        %684 = vmatpush1.bf16.msra.mxu0 0
        %685 = vmatprep.subr.bf16.mxu0 0
        %686 = vmatpush1.bf16.msra.mxu0 0
        %687 = vmatprep.subr.bf16.mxu0 0
        %688 = vmatpush1.bf16.msra.mxu0 0
        %689 = vmatprep.subr.bf16.mxu0 0
        %690 = vmatpush1.bf16.msra.mxu0 0
        %691 = vmatprep.subr.bf16.mxu0 0
        %692 = vmatpush1.bf16.msra.mxu0 0
        %693 = vmatprep.subr.bf16.mxu0 0
        %694 = vmatpush1.bf16.msra.mxu0 0
        %695 = vmatprep.mubr.bf16.mxu0 0
        %696 = vmatmul.mubr.bf16.gmra.mrb[0].mxu0 %v659
        %v697 = vpop.f32.mrb[0].mxu0
        %v698 = vadd.f32 0.0, %v697
        %v699 = vpop.f32.mrb[0].mxu0
        %v700 = vpop.f32.mrb[0].mxu0
        %v701 = vpop.f32.mrb[0].mxu0
        %702 = vdwg.mxu0
        %v704 = vsel %vm559, %v610, 0
        %v706 = vsel %vm615, %v312, 0
        %708 = vmatprep.subr.bf16.mxu0 0
        %709 = vmatpush1.bf16.msra.mxu0 %v706
        %710 = vmatprep.subr.bf16.mxu0 0
        %711 = vmatpush1.bf16.msra.mxu0 0
        %712 = vmatprep.subr.bf16.mxu0 0
        %713 = vmatpush1.bf16.msra.mxu0 0
        %714 = vmatprep.subr.bf16.mxu0 0
        %715 = vmatpush1.bf16.msra.mxu0 0
        %716 = vmatprep.subr.bf16.mxu0 0
        %717 = vmatpush1.bf16.msra.mxu0 0
        %718 = vmatprep.subr.bf16.mxu0 0
        %719 = vmatpush1.bf16.msra.mxu0 0
        %720 = vmatprep.subr.bf16.mxu0 0
        %721 = vmatpush1.bf16.msra.mxu0 0
        %722 = vmatprep.subr.bf16.mxu0 0
        %723 = vmatpush1.bf16.msra.mxu0 0
        %724 = vmatprep.subr.bf16.mxu0 0
        %725 = vmatpush1.bf16.msra.mxu0 0
        %726 = vmatprep.subr.bf16.mxu0 0
        %727 = vmatpush1.bf16.msra.mxu0 0
        %728 = vmatprep.subr.bf16.mxu0 0
        %729 = vmatpush1.bf16.msra.mxu0 0
        %730 = vmatprep.subr.bf16.mxu0 0
        %731 = vmatpush1.bf16.msra.mxu0 0
        %732 = vmatprep.subr.bf16.mxu0 0
        %733 = vmatpush1.bf16.msra.mxu0 0
        %734 = vmatprep.subr.bf16.mxu0 0
        %735 = vmatpush1.bf16.msra.mxu0 0
        %736 = vmatprep.subr.bf16.mxu0 0
        %737 = vmatpush1.bf16.msra.mxu0 0
        %738 = vmatprep.subr.bf16.mxu0 0
        %739 = vmatpush1.bf16.msra.mxu0 0
        %740 = vmatprep.mubr.bf16.mxu0 0
        %741 = vmatmul.mubr.bf16.gmra.mrb[0].mxu0 %v704
        %v742 = vpop.f32.mrb[0].mxu0
        %v743 = vadd.f32 0.0, %v742
        %v744 = vpop.f32.mrb[0].mxu0
        %v745 = vpop.f32.mrb[0].mxu0
        %v746 = vpop.f32.mrb[0].mxu0
        %747 = vdwg.mxu0
        %v749 = vsel %vm559, %v611, 0
        %v751 = vsel %vm615, %v313, 0
        %753 = vmatprep.subr.bf16.mxu0 0
        %754 = vmatpush1.bf16.msra.mxu0 %v751
        %755 = vmatprep.subr.bf16.mxu0 0
        %756 = vmatpush1.bf16.msra.mxu0 0
        %757 = vmatprep.subr.bf16.mxu0 0
        %758 = vmatpush1.bf16.msra.mxu0 0
        %759 = vmatprep.subr.bf16.mxu0 0
        %760 = vmatpush1.bf16.msra.mxu0 0
        %761 = vmatprep.subr.bf16.mxu0 0
        %762 = vmatpush1.bf16.msra.mxu0 0
        %763 = vmatprep.subr.bf16.mxu0 0
        %764 = vmatpush1.bf16.msra.mxu0 0
        %765 = vmatprep.subr.bf16.mxu0 0
        %766 = vmatpush1.bf16.msra.mxu0 0
        %767 = vmatprep.subr.bf16.mxu0 0
        %768 = vmatpush1.bf16.msra.mxu0 0
        %769 = vmatprep.subr.bf16.mxu0 0
        %770 = vmatpush1.bf16.msra.mxu0 0
        %771 = vmatprep.subr.bf16.mxu0 0
        %772 = vmatpush1.bf16.msra.mxu0 0
        %773 = vmatprep.subr.bf16.mxu0 0
        %774 = vmatpush1.bf16.msra.mxu0 0
        %775 = vmatprep.subr.bf16.mxu0 0
        %776 = vmatpush1.bf16.msra.mxu0 0
        %777 = vmatprep.subr.bf16.mxu0 0
        %778 = vmatpush1.bf16.msra.mxu0 0
        %779 = vmatprep.subr.bf16.mxu0 0
        %780 = vmatpush1.bf16.msra.mxu0 0
        %781 = vmatprep.subr.bf16.mxu0 0
        %782 = vmatpush1.bf16.msra.mxu0 0
        %783 = vmatprep.subr.bf16.mxu0 0
        %784 = vmatpush1.bf16.msra.mxu0 0
        %785 = vmatprep.mubr.bf16.mxu0 0
        %786 = vmatmul.mubr.bf16.gmra.mrb[0].mxu0 %v749
        %v787 = vpop.f32.mrb[0].mxu0
        %v788 = vadd.f32 0.0, %v787
        %v789 = vpop.f32.mrb[0].mxu0
        %v790 = vpop.f32.mrb[0].mxu0
        %v791 = vpop.f32.mrb[0].mxu0
        %792 = vdwg.mxu0
        %v793 = vsel %vm378, %v653, 0.0
        %v794 = vrot.slane %v793, 4
        %v795 = vadd.f32 %v793, %v794
        %v796 = vrot.slane %v795, 2
        %v797 = vadd.f32 %v795, %v796
        %v798 = vrot.slane %v797, 1
        %v799 = vadd.f32 %v797, %v798
        %v800 = vsel %vm378, %v698, 0.0
        %v801 = vrot.slane %v800, 4
        %v802 = vadd.f32 %v800, %v801
        %v803 = vrot.slane %v802, 2
        %v804 = vadd.f32 %v802, %v803
        %v805 = vrot.slane %v804, 1
        %v806 = vadd.f32 %v804, %v805
        %v807 = vsel %vm378, %v743, 0.0
        %v808 = vrot.slane %v807, 4
        %v809 = vadd.f32 %v807, %v808
        %v810 = vrot.slane %v809, 2
        %v811 = vadd.f32 %v809, %v810
        %v812 = vrot.slane %v811, 1
        %v813 = vadd.f32 %v811, %v812
        %v814 = vsel %vm378, %v788, 0.0
        %v815 = vrot.slane %v814, 4
        %v816 = vadd.f32 %v814, %v815
        %v817 = vrot.slane %v816, 2
        %v818 = vadd.f32 %v816, %v817
        %v819 = vrot.slane %v818, 1
        %v820 = vadd.f32 %v818, %v819
        %v821 = vld [vmem:[%s3] sm:$0xff]
        %v822 = vld [vmem:[%s3 + $0x8] sm:$0xff]
        %v823 = vld [vmem:[%s3 + $0x10] sm:$0xff]
        %v824 = vld [vmem:[%s3 + $0x18] sm:$0xff]
        %v825 = vld [vmem:[%s5] sm:$0x1]
        %v827 = vlaneseq
        %v828 = vshrl.u32 %v827, 7
        %v829 = vsub.s32 0, %v828
        %v830 = vrot.slane %v825, %v829
        %vm836 = vcmask 1041409
        %v837 = vsel %vm836, %v806, %v799
        %vm838 = vcmask 1042434
        %v839 = vsel %vm838, %v813, %v837
        %vm840 = vcmask 1043459
        %v841 = vsel %vm840, %v820, %v839
        %v842 = vsel %vm378, %v841, 0
        %844 = vmatprep.subr.mxu0 0.0
        %845 = vmatpush1.msra.mxu0 %v821
        %846 = vmatprep.subr.mxu0 0.0
        %847 = vmatpush1.msra.mxu0 %v822
        %848 = vmatprep.subr.mxu0 0.0
        %849 = vmatpush1.msra.mxu0 %v823
        %850 = vmatprep.subr.mxu0 0.0
        %851 = vmatpush1.msra.mxu0 %v824
        %852 = vmatprep.subr.mxu0 0.0
        %853 = vmatpush1.msra.mxu0 0.0
        %854 = vmatprep.subr.mxu0 0.0
        %855 = vmatpush1.msra.mxu0 0.0
        %856 = vmatprep.subr.mxu0 0.0
        %857 = vmatpush1.msra.mxu0 0.0
        %858 = vmatprep.subr.mxu0 0.0
        %859 = vmatpush1.msra.mxu0 0.0
        %860 = vmatprep.subr.mxu0 0.0
        %861 = vmatpush1.msra.mxu0 0.0
        %862 = vmatprep.subr.mxu0 0.0
        %863 = vmatpush1.msra.mxu0 0.0
        %864 = vmatprep.subr.mxu0 0.0
        %865 = vmatpush1.msra.mxu0 0.0
        %866 = vmatprep.subr.mxu0 0.0
        %867 = vmatpush1.msra.mxu0 0.0
        %868 = vmatprep.subr.mxu0 0.0
        %869 = vmatpush1.msra.mxu0 0.0
        %870 = vmatprep.subr.mxu0 0.0
        %871 = vmatpush1.msra.mxu0 0.0
        %872 = vmatprep.subr.mxu0 0.0
        %873 = vmatpush1.msra.mxu0 0.0
        %874 = vmatprep.subr.mxu0 0.0
        %875 = vmatpush1.msra.mxu0 0.0
        %876 = vmatprep.subr.mxu0 0.0
        %877 = vmatpush1.msra.mxu0 0.0
        %878 = vmatprep.subr.mxu0 0.0
        %879 = vmatpush1.msra.mxu0 0.0
        %880 = vmatprep.subr.mxu0 0.0
        %881 = vmatpush1.msra.mxu0 0.0
        %882 = vmatprep.subr.mxu0 0.0
        %883 = vmatpush1.msra.mxu0 0.0
        %884 = vmatprep.subr.mxu0 0.0
        %885 = vmatpush1.msra.mxu0 0.0
        %886 = vmatprep.subr.mxu0 0.0
        %887 = vmatpush1.msra.mxu0 0.0
        %888 = vmatprep.subr.mxu0 0.0
        %889 = vmatpush1.msra.mxu0 0.0
        %890 = vmatprep.subr.mxu0 0.0
        %891 = vmatpush1.msra.mxu0 0.0
        %892 = vmatprep.subr.mxu0 0.0
        %893 = vmatpush1.msra.mxu0 0.0
        %894 = vmatprep.subr.mxu0 0.0
        %895 = vmatpush1.msra.mxu0 0.0
        %896 = vmatprep.subr.mxu0 0.0
        %897 = vmatpush1.msra.mxu0 0.0
        %898 = vmatprep.subr.mxu0 0.0
        %899 = vmatpush1.msra.mxu0 0.0
        %900 = vmatprep.subr.mxu0 0.0
        %901 = vmatpush1.msra.mxu0 0.0
        %902 = vmatprep.subr.mxu0 0.0
        %903 = vmatpush1.msra.mxu0 0.0
        %904 = vmatprep.subr.mxu0 0.0
        %905 = vmatpush1.msra.mxu0 0.0
        %906 = vmatprep.subr.mxu0 0.0
        %907 = vmatpush1.msra.mxu0 0.0
        %908 = vmatprep.mubr.f32.mxu0 0.0
        %909 = vmatmul.mubr.f32.gmra.mrb[0].mxu0 %v842
        %v910 = vpop.f32.mrb[0].mxu0
        %v911 = vadd.f32 %v830, %v910
        %v912 = vpop.f32.mrb[0].mxu0
        %913 = vdwg.mxu0
        %v914 = vmax.f32 %v911, 0.0
        %v915 = vld [vmem:[#allocation2] sm:$0xff]
        %v916 = vld [vmem:[#allocation2 + $0x8] sm:$0xff]
        %v917 = vld [vmem:[#allocation2 + $0x10] sm:$0xff]
        %v918 = vld [vmem:[#allocation2 + $0x18] sm:$0xff]
        %v919 = vld [vmem:[#allocation2 + $0x20] sm:$0xff]
        %v920 = vld [vmem:[#allocation2 + $0x28] sm:$0xff]
        %v921 = vld [vmem:[#allocation2 + $0x30] sm:$0xff]
        %v922 = vld [vmem:[#allocation2 + $0x38] sm:$0xff]
        %v923 = vld [vmem:[#allocation2 + $0x40] sm:$0xff]
        %v924 = vld [vmem:[#allocation2 + $0x48] sm:$0xff]
        %v925 = vld [vmem:[#allocation2 + $0x50] sm:$0xff]
        %v926 = vld [vmem:[#allocation2 + $0x58] sm:$0xff]
        %v927 = vld [vmem:[#allocation2 + $0x60] sm:$0xff]
        %v928 = vld [vmem:[#allocation2 + $0x68] sm:$0xff]
        %v929 = vld [vmem:[#allocation2 + $0x70] sm:$0xff]
        %v930 = vld [vmem:[#allocation2 + $0x78] sm:$0xff]
        %s931 = scalar_lea.vmem %s5, 1
        %v932 = vld [vmem:[%s931] sm:$0x1]
        %v934 = vlaneseq
        %v935 = vshrl.u32 %v934, 7
        %v936 = vsub.s32 0, %v935
        %v937 = vrot.slane %v932, %v936
        %939 = vmatprep.subr.mxu0 0.0
        %940 = vmatpush1.msra.mxu0 %v915
        %941 = vmatprep.subr.mxu0 0.0
        %942 = vmatpush1.msra.mxu0 %v916
        %943 = vmatprep.subr.mxu0 0.0
        %944 = vmatpush1.msra.mxu0 %v917
        %945 = vmatprep.subr.mxu0 0.0
        %946 = vmatpush1.msra.mxu0 %v918
        %947 = vmatprep.subr.mxu0 0.0
        %948 = vmatpush1.msra.mxu0 %v919
        %949 = vmatprep.subr.mxu0 0.0
        %950 = vmatpush1.msra.mxu0 %v920
        %951 = vmatprep.subr.mxu0 0.0
        %952 = vmatpush1.msra.mxu0 %v921
        %953 = vmatprep.subr.mxu0 0.0
        %954 = vmatpush1.msra.mxu0 %v922
        %955 = vmatprep.subr.mxu0 0.0
        %956 = vmatpush1.msra.mxu0 %v923
        %957 = vmatprep.subr.mxu0 0.0
        %958 = vmatpush1.msra.mxu0 %v924
        %959 = vmatprep.subr.mxu0 0.0
        %960 = vmatpush1.msra.mxu0 %v925
        %961 = vmatprep.subr.mxu0 0.0
        %962 = vmatpush1.msra.mxu0 %v926
        %963 = vmatprep.subr.mxu0 0.0
        %964 = vmatpush1.msra.mxu0 %v927
        %965 = vmatprep.subr.mxu0 0.0
        %966 = vmatpush1.msra.mxu0 %v928
        %967 = vmatprep.subr.mxu0 0.0
        %968 = vmatpush1.msra.mxu0 %v929
        %969 = vmatprep.subr.mxu0 0.0
        %970 = vmatpush1.msra.mxu0 %v930
        %971 = vmatprep.subr.mxu0 0.0
        %972 = vmatpush1.msra.mxu0 0.0
        %973 = vmatprep.subr.mxu0 0.0
        %974 = vmatpush1.msra.mxu0 0.0
        %975 = vmatprep.subr.mxu0 0.0
        %976 = vmatpush1.msra.mxu0 0.0
        %977 = vmatprep.subr.mxu0 0.0
        %978 = vmatpush1.msra.mxu0 0.0
        %979 = vmatprep.subr.mxu0 0.0
        %980 = vmatpush1.msra.mxu0 0.0
        %981 = vmatprep.subr.mxu0 0.0
        %982 = vmatpush1.msra.mxu0 0.0
        %983 = vmatprep.subr.mxu0 0.0
        %984 = vmatpush1.msra.mxu0 0.0
        %985 = vmatprep.subr.mxu0 0.0
        %986 = vmatpush1.msra.mxu0 0.0
        %987 = vmatprep.subr.mxu0 0.0
        %988 = vmatpush1.msra.mxu0 0.0
        %989 = vmatprep.subr.mxu0 0.0
        %990 = vmatpush1.msra.mxu0 0.0
        %991 = vmatprep.subr.mxu0 0.0
        %992 = vmatpush1.msra.mxu0 0.0
        %993 = vmatprep.subr.mxu0 0.0
        %994 = vmatpush1.msra.mxu0 0.0
        %995 = vmatprep.subr.mxu0 0.0
        %996 = vmatpush1.msra.mxu0 0.0
        %997 = vmatprep.subr.mxu0 0.0
        %998 = vmatpush1.msra.mxu0 0.0
        %999 = vmatprep.subr.mxu0 0.0
        %1000 = vmatpush1.msra.mxu0 0.0
        %1001 = vmatprep.subr.mxu0 0.0
        %1002 = vmatpush1.msra.mxu0 0.0
        %1003 = vmatprep.mubr.f32.mxu0 0.0
        %1004 = vmatmul.mubr.f32.gmra.mrb[0].mxu0 %v914
        %v1005 = vpop.f32.mrb[0].mxu0
        %v1006 = vadd.f32 %v937, %v1005
        %v1007 = vpop.f32.mrb[0].mxu0
        %1008 = vdwg.mxu0
        %v1009 = vmax.f32 %v1006, 0.0
        %s1010 = scalar_lea.vmem [#allocation2], 128
        %v1011 = vld [vmem:[%s1010] sm:$0xff]
        %v1012 = vld [vmem:[%s1010 + $0x8] sm:$0xff]
        %v1013 = vld [vmem:[%s1010 + $0x10] sm:$0xff]
        %v1014 = vld [vmem:[%s1010 + $0x18] sm:$0xff]
        %v1015 = vld [vmem:[%s1010 + $0x20] sm:$0xff]
        %v1016 = vld [vmem:[%s1010 + $0x28] sm:$0xff]
        %v1017 = vld [vmem:[%s1010 + $0x30] sm:$0xff]
        %v1018 = vld [vmem:[%s1010 + $0x38] sm:$0xff]
        %v1019 = vld [vmem:[%s1010 + $0x40] sm:$0xff]
        %v1020 = vld [vmem:[%s1010 + $0x48] sm:$0xff]
        %v1021 = vld [vmem:[%s1010 + $0x50] sm:$0xff]
        %v1022 = vld [vmem:[%s1010 + $0x58] sm:$0xff]
        %v1023 = vld [vmem:[%s1010 + $0x60] sm:$0xff]
        %v1024 = vld [vmem:[%s1010 + $0x68] sm:$0xff]
        %v1025 = vld [vmem:[%s1010 + $0x70] sm:$0xff]
        %v1026 = vld [vmem:[%s1010 + $0x78] sm:$0xff]
        %s1027 = scalar_lea.vmem %s5, 2
        %v1028 = vld [vmem:[%s1027] sm:$0x1]
        %v1030 = vlaneseq
        %v1031 = vshrl.u32 %v1030, 7
        %v1032 = vsub.s32 0, %v1031
        %v1033 = vrot.slane %v1028, %v1032
        %1035 = vmatprep.subr.mxu0 0.0
        %1036 = vmatpush1.msra.mxu0 %v1011
        %1037 = vmatprep.subr.mxu0 0.0
        %1038 = vmatpush1.msra.mxu0 %v1012
        %1039 = vmatprep.subr.mxu0 0.0
        %1040 = vmatpush1.msra.mxu0 %v1013
        %1041 = vmatprep.subr.mxu0 0.0
        %1042 = vmatpush1.msra.mxu0 %v1014
        %1043 = vmatprep.subr.mxu0 0.0
        %1044 = vmatpush1.msra.mxu0 %v1015
        %1045 = vmatprep.subr.mxu0 0.0
        %1046 = vmatpush1.msra.mxu0 %v1016
        %1047 = vmatprep.subr.mxu0 0.0
        %1048 = vmatpush1.msra.mxu0 %v1017
        %1049 = vmatprep.subr.mxu0 0.0
        %1050 = vmatpush1.msra.mxu0 %v1018
        %1051 = vmatprep.subr.mxu0 0.0
        %1052 = vmatpush1.msra.mxu0 %v1019
        %1053 = vmatprep.subr.mxu0 0.0
        %1054 = vmatpush1.msra.mxu0 %v1020
        %1055 = vmatprep.subr.mxu0 0.0
        %1056 = vmatpush1.msra.mxu0 %v1021
        %1057 = vmatprep.subr.mxu0 0.0
        %1058 = vmatpush1.msra.mxu0 %v1022
        %1059 = vmatprep.subr.mxu0 0.0
        %1060 = vmatpush1.msra.mxu0 %v1023
        %1061 = vmatprep.subr.mxu0 0.0
        %1062 = vmatpush1.msra.mxu0 %v1024
        %1063 = vmatprep.subr.mxu0 0.0
        %1064 = vmatpush1.msra.mxu0 %v1025
        %1065 = vmatprep.subr.mxu0 0.0
        %1066 = vmatpush1.msra.mxu0 %v1026
        %1067 = vmatprep.subr.mxu0 0.0
        %1068 = vmatpush1.msra.mxu0 0.0
        %1069 = vmatprep.subr.mxu0 0.0
        %1070 = vmatpush1.msra.mxu0 0.0
        %1071 = vmatprep.subr.mxu0 0.0
        %1072 = vmatpush1.msra.mxu0 0.0
        %1073 = vmatprep.subr.mxu0 0.0
        %1074 = vmatpush1.msra.mxu0 0.0
        %1075 = vmatprep.subr.mxu0 0.0
        %1076 = vmatpush1.msra.mxu0 0.0
        %1077 = vmatprep.subr.mxu0 0.0
        %1078 = vmatpush1.msra.mxu0 0.0
        %1079 = vmatprep.subr.mxu0 0.0
        %1080 = vmatpush1.msra.mxu0 0.0
        %1081 = vmatprep.subr.mxu0 0.0
        %1082 = vmatpush1.msra.mxu0 0.0
        %1083 = vmatprep.subr.mxu0 0.0
        %1084 = vmatpush1.msra.mxu0 0.0
        %1085 = vmatprep.subr.mxu0 0.0
        %1086 = vmatpush1.msra.mxu0 0.0
        %1087 = vmatprep.subr.mxu0 0.0
        %1088 = vmatpush1.msra.mxu0 0.0
        %1089 = vmatprep.subr.mxu0 0.0
        %1090 = vmatpush1.msra.mxu0 0.0
        %1091 = vmatprep.subr.mxu0 0.0
        %1092 = vmatpush1.msra.mxu0 0.0
        %1093 = vmatprep.subr.mxu0 0.0
        %1094 = vmatpush1.msra.mxu0 0.0
        %1095 = vmatprep.subr.mxu0 0.0
        %1096 = vmatpush1.msra.mxu0 0.0
        %1097 = vmatprep.subr.mxu0 0.0
        %1098 = vmatpush1.msra.mxu0 0.0
        %1099 = vmatprep.mubr.f32.mxu0 0.0
        %1100 = vmatmul.mubr.f32.gmra.mrb[0].mxu0 %v1009
        %v1101 = vpop.f32.mrb[0].mxu0
        %v1102 = vadd.f32 %v1033, %v1101
        %v1103 = vpop.f32.mrb[0].mxu0
        %1104 = vdwg.mxu0
        %v1105 = vmax.f32 %v1102, 0.0
        %v1106 = vlaneseq
        %v1107 = vand.u32 %v1106, 127
        %vm1108 = vcmp.lt.s32.totalorder %v1107, 2
        %v1109 = vsel %vm1108, %v1105, -1e+30
        %v1110 = vsel %vm615, %v1109, -inf
        %1111 = vmax.xlane.f32.xlu0 %v1110
        %v1112 = vpop.xlane.xlu0 %1111
        %v1113 = vsub.f32 %v1109, %v1112
        %v1114 = vmul.f32 %v1113, 1.442695
        %v1115 = vpow.pop %v1114
        %v1116 = vsel %vm615, %v1115, 0.0
        %1117 = vadd.xlane.f32.xlu0 %v1116
        %v1118 = vpop.xlane.xlu0 %1117
        %v1119 = vrcp.pop %v1118
        %v1120 = vmul.f32 %v1115, %v1119
        %v1121 = vsel %vm1108, %v1120, 0.0
        %v1124 = vunpack.c.l.s4 1966171168
        %v1125 = vunpack.c.0.s8 %v1124
        %v1126 = vlaneseq
        %v1127 = vshrl.u32 %v1126, 7
        %v1128 = vsub.s32 %v1125, %v1127
        %v1129 = vrot.slane %v1121, %v1128
        %v1130 = vcombine.high %v1129, %v1129
        %v1132 = vunpack.c.l.s4 1966171168
        %v1133 = vunpack.c.0.s8 %v1132
        %v1134 = vlaneseq
        %v1135 = vshrl.u32 %v1134, 7
        %v1136 = vsub.s32 %v1133, %v1135
        %v1137 = vrot.slane %v1129, %v1136
        %v1139 = vunpack.c.l.s4 1966171168
        %v1140 = vunpack.c.0.s8 %v1139
        %v1141 = vlaneseq
        %v1142 = vshrl.u32 %v1141, 7
        %v1143 = vsub.s32 %v1140, %v1142
        %v1144 = vrot.slane %v1130, %v1143
        %v1145 = vcombine.high %v1137, %v1137
        %v1146 = vcombine.high %v1144, %v1144
        %1151 = vst [vmem:[%s290] sm:$0x1] %v1137
        %1152 = vst [vmem:[%s290 + $0x1] sm:$0x1] %v1144
        %1153 = vst [vmem:[%s290 + $0x2] sm:$0x1] %v1145
        %1154 = vst [vmem:[%s290 + $0x3] sm:$0x1] %v1146
        %s1155 = sand.u32 %s170, 1
        %s1156 = scalar_lea.sflag [#allocation4], %s1155
        %s1157 = sand.u32 %s170, 1
        %s1158 = smul.addr %s1157, 4
        %s1159 = scalar_lea.vmem [#allocation5], %s1158
        // Predicated region
        $region49: #{tpu_custom_call.1} parent=43 // pred_check
          %p1160 = pneg %p180
        $region50: #{tpu_custom_call.1} parent=43 // pred_check_branch
          %1162 = sbr.rel (%p1160) target = $region52
        $region51: #{tpu_custom_call.1} parent=43 // pred_region
          %s1163 = smul.u32 4, %s21
          %s1165 = ssub.s32 64, 64
          %1166 = vsyncadd %s1156, %s1165
          %s1167 = smul.addr %s1163, 16
          %s1168 = scalar_lea.hbm %s6, %s1167
          %s1169 = sshll.u32 %s1159, 4
          %s1170 = int_to_ptr.vmem [resolvable:$true] %s1169
          %1175 = dma.vmem_to_hbm [thread:$0]  %s1170, 64, %s1168, %s1156, 16, 16, 1
        $region52: #{tpu_custom_call.1} parent=43 // pred_fallthru
          _
      $region44: #{tpu_custom_call.1} parent=5 // pred_fallthru
        _
      %p1176 = scmp.le.s32.totalorder 2, %s16
      // Predicated region
      $region53: #{tpu_custom_call.1} parent=5 // pred_check
        %p1177 = pneg %p1176
      $region54: #{tpu_custom_call.1} parent=5 // pred_check_branch
        %1179 = sbr.rel (%p1177) target = $region56
      $region55: #{tpu_custom_call.1} parent=5 // pred_region
        %s1180 = ssub.s32 %s16, 2
        // Predicated region
        $region57: #{tpu_custom_call.1} parent=55 // pred_check
          %p1181 = pneg %p186
        $region58: #{tpu_custom_call.1} parent=55 // pred_check_branch
          %1183 = sbr.rel (%p1181) target = $region60
        $region59: #{tpu_custom_call.1} parent=55 // pred_region
          %s1184 = sand.u32 %s171, 1
          %s1185 = scalar_lea.sflag [#allocation4], %s1184
          %s1186 = sand.u32 %s171, 1
          %s1187 = smul.addr %s1186, 4
          %s1188 = scalar_lea.vmem [#allocation5], %s1187
          %1189 = dma.done %s1185, 64
        $region60: #{tpu_custom_call.1} parent=55 // pred_fallthru
          _
      $region56: #{tpu_custom_call.1} parent=5 // pred_fallthru
        _
    $region6: #{tpu_custom_call.1} parent=1 // loop_footer
      %s20 = sadd.s32 1, %s16
    $region7: #{tpu_custom_call.1} parent=1 // loop_footer_branch
      %15 = sbr.rel target = $region3
    $region8: #{tpu_custom_call.1} parent=1 // loop_exit
      _
    %1190 = vsyncpa [#allocation3], 1
    %s1191 = scalar_lea.sflag [#allocation3], 1
    %1192 = vsyncpa %s1191, 1
    %1193 = vsyncpa [#allocation4], 1
    %s1194 = scalar_lea.sflag [#allocation4], 1
    %1195 = vsyncpa %s1194, 1

</llo_original>
